<compile_context>
chip_gen: v5e
topology: v5e:2x2
jax: 0.10.0
libtpu: 0.0.40
codegen_flags: <defaults>
</compile_context>

<pallas_src>
import functools

import jax
import jax.numpy as jnp
from jax.experimental import pallas as pl
from jax.experimental.pallas import tpu as pltpu


def _round_up(x, m):
    return ((x + m - 1) // m) * m


def _autoencoder_kernel(num_hidden,
                        x_ref, wt_ref, wf_ref, bf_ref,
                        wm_ref, bm_ref, wl_ref, bl_ref,
                        loss_ref, acc_ref):
    """One row tile (whole samples) of the AutoEncoder forward pass.

    x_ref   : (TR, P_in)      zero-padded input rows, TR = S * d
    wt_ref  : (d, d)          w_adj^T
    wf_ref  : (P_in, P_h)     encoder layer-0 weight      bf_ref : (1, P_h)
    wm_ref  : (2H, P_h, P_h)  hid->hid weights            bm_ref : (2H, 1, P_h)
    wl_ref  : (P_h, P_in)     decoder output weight       bl_ref : (1, P_in)
    loss_ref: (1, 1) SMEM output;  acc_ref: (1, 1) SMEM scratch accumulator
    """
    step = pl.program_id(0)
    d = wt_ref.shape[0]
    tr = x_ref.shape[0]
    s = tr // d
    p_h = wf_ref.shape[1]

    x = x_ref[...]                                               # (TR, P_in)

    # ---------------- encoder ----------------
    h = jnp.dot(x, wf_ref[...], preferred_element_type=jnp.float32) + bf_ref[...]
    h = jnp.maximum(h, 0.0)
    for i in range(num_hidden - 1):                              # hidden layers 1..H-1 (+ReLU)
        h = jnp.dot(h, wm_ref[i], preferred_element_type=jnp.float32) + bm_ref[i]
        h = jnp.maximum(h, 0.0)
    # encoder output layer (no activation)
    h = (jnp.dot(h, wm_ref[num_hidden - 1], preferred_element_type=jnp.float32)
         + bm_ref[num_hidden - 1])

    # ------ mixing: einsum('ijk,jl->ilk', enc, w_adj) as per-sample matmul ------
    # mixed[s, l, :] = sum_j w_adj[j, l] * enc[s, j, :]  ==  w_adj^T @ enc[s]
    h3 = h.reshape(s, d, p_h)                                    # (S, d, P_h)
    wtb = jnp.broadcast_to(wt_ref[...], (s, d, d))               # (S, d, d)
    h3 = jax.lax.dot_general(
        wtb, h3,
        dimension_numbers=(((2,), (1,)), ((0,), (0,))),          # batch s, contract j
        preferred_element_type=jnp.float32)                      # (S, d, P_h)
    h = h3.reshape(tr, p_h)

    # ---------------- decoder ----------------
    for i in range(num_hidden):                                  # hidden layers (+ReLU)
        h = (jnp.dot(h, wm_ref[num_hidden + i], preferred_element_type=jnp.float32)
             + bm_ref[num_hidden + i])
        h = jnp.maximum(h, 0.0)
    x_est = (jnp.dot(h, wl_ref[...], preferred_element_type=jnp.float32)
             + bl_ref[...])                                      # (TR, P_in)

    # ------ loss: running sum of squared error across row tiles ------
    diff = x - x_est

    @pl.when(step == 0)
    def _():
        acc_ref[0, 0] = 0.0

    acc_ref[0, 0] += jnp.sum(diff * diff)

    @pl.when(step == pl.num_programs(0) - 1)
    def _():
        loss_ref[0, 0] = acc_ref[0, 0]


def _pick_samples_per_tile(n, d, target_rows=512):
    """Largest divisor s of n with s*d <= target_rows and 8-sublane-aligned rows."""
    best = None
    for s in range(1, n + 1):
        if n % s == 0 and s * d <= target_rows and (s * d) % 8 == 0:
            best = s
    return best if best is not None else n


def autoencoder_forward(x, w, enc_params, dec_params, samples_per_tile=None):
    """Forward pass of the CASTLE/GAE AutoEncoder.

    x: (n, d, in_dim) f32;  w: (d, d) f32.
    enc_params / dec_params: lists of (W, b) with W stored (in, out), b (1, out).
    Returns (mse_loss, w_adj), matching the torch module.
    """
    n, d, in_dim = x.shape
    hid = enc_params[0][0].shape[1]
    num_hidden = len(enc_params) - 1
    assert num_hidden >= 1 and len(dec_params) == num_hidden + 1
    rows = n * d

    p_in = _round_up(in_dim, 128)        # pad each feature dim only to the lane quantum
    p_h = _round_up(hid, 128)

    if samples_per_tile is None:
        samples_per_tile = _pick_samples_per_tile(n, d)
    assert n % samples_per_tile == 0
    tr = samples_per_tile * d            # rows per grid step (whole samples)
    num_tiles = rows // tr

    def pad2(a, r, c):
        a = jnp.asarray(a, jnp.float32)
        return jnp.pad(a, ((0, r - a.shape[0]), (0, c - a.shape[1])))

    # ---- pack parameters: first / mid (hid->hid) / last groups ----
    wf = pad2(enc_params[0][0], p_in, p_h)                       # (P_in, P_h)
    bf = pad2(enc_params[0][1], 1, p_h)                          # (1, P_h)
    mid = list(enc_params[1:]) + list(dec_params[:-1])           # 2H hid->hid layers
    wm = jnp.stack([pad2(W, p_h, p_h) for (W, _) in mid])        # (2H, P_h, P_h)
    bm = jnp.stack([pad2(b, 1, p_h) for (_, b) in mid])          # (2H, 1, P_h)
    wl = pad2(dec_params[-1][0], p_h, p_in)                      # (P_h, P_in)
    bl = pad2(dec_params[-1][1], 1, p_in)                        # (1, P_in)

    # ---- input + adjacency (layout plumbing done in plain JAX) ----
    x_flat = jnp.pad(x.reshape(rows, in_dim).astype(jnp.float32),
                     ((0, 0), (0, p_in - in_dim)))               # (rows, P_in)
    w_adj = (1.0 - jnp.eye(d, dtype=jnp.float32)) * jnp.asarray(w, jnp.float32)
    wt = w_adj.T                                                 # (d, d)

    l_mid = 2 * num_hidden
    flops = rows * (2 * p_in * p_h + l_mid * 2 * p_h * p_h + 2 * p_h * p_in
                    + 2 * d * p_h + 3 * max(p_in, p_h))
    bytes_accessed = 4 * (x_flat.size + wt.size + wf.size + bf.size
                          + wm.size + bm.size + wl.size + bl.size + 1)

    weight_bytes = 4 * int(wt.size + wf.size + bf.size + wm.size + bm.size
                           + wl.size + bl.size)
    tile_bytes = 4 * tr * max(p_in, p_h)
    vmem_needed = weight_bytes + 8 * tile_bytes + (1 << 20)
    vmem_limit = int(min(64 * 2 ** 20, max(16 * 2 ** 20, 2 * vmem_needed)))

    def resident(ndim):                  # weights: same block every grid step
        return lambda i: (0,) * ndim

    grid_spec = pltpu.PrefetchScalarGridSpec(
        num_scalar_prefetch=0,
        grid=(num_tiles,),
        in_specs=[
            pl.BlockSpec((tr, p_in), lambda i: (i, 0)),          # x row tile (streamed)
            pl.BlockSpec((d, d), resident(2)),                   # w_adj^T
            pl.BlockSpec((p_in, p_h), resident(2)),              # encoder first weight
            pl.BlockSpec((1, p_h), resident(2)),                 # encoder first bias
            pl.BlockSpec((l_mid, p_h, p_h), resident(3)),        # hid->hid weight stack
            pl.BlockSpec((l_mid, 1, p_h), resident(3)),          # hid->hid bias stack
            pl.BlockSpec((p_h, p_in), resident(2)),              # decoder last weight
            pl.BlockSpec((1, p_in), resident(2)),                # decoder last bias
        ],
        out_specs=pl.BlockSpec((1, 1), resident(2),
                               memory_space=pltpu.MemorySpace.SMEM),
        scratch_shapes=[pltpu.SMEM((1, 1), jnp.float32)],        # running loss
    )

    kernel = functools.partial(_autoencoder_kernel, num_hidden)
    loss = pl.pallas_call(
        kernel,
        out_shape=jax.ShapeDtypeStruct((1, 1), jnp.float32),
        grid_spec=grid_spec,
        compiler_params=pltpu.CompilerParams(
            dimension_semantics=("arbitrary",),                  # loss carries across tiles
            vmem_limit_bytes=vmem_limit),
        cost_estimate=pl.CostEstimate(flops=int(flops), transcendentals=0,
                                      bytes_accessed=int(bytes_accessed)),
    )(x_flat, wt, wf, bf, wm, bm, wl, bl)
    return loss[0, 0], w_adj


# ------------------------- reference (pure JAX) -------------------------
def _reference(x, w, enc_params, dec_params):
    n, d, in_dim = x.shape

    def mlp(h, params):
        for (W, b) in params[:-1]:
            h = jnp.maximum(h @ W + b, 0.0)
        W, b = params[-1]
        return h @ W + b

    w_adj = (1.0 - jnp.eye(d)) * w
    enc = mlp(x.reshape(-1, in_dim), enc_params).reshape(n, d, -1)
    mixed = jnp.einsum('ijk,jl->ilk', enc, w_adj)
    x_est = mlp(mixed.reshape(n * d, -1), dec_params).reshape(n, d, in_dim)
    loss = jnp.sum(jnp.square(x - x_est))
    return loss, w_adj


# ------------------------------- driver ----------------------------------
def _make_mlp_params(key, input_dim, layers, units, output_dim):
    """Mirror MLP.__init__: `layers` hidden Linear layers + one output Linear."""
    params = []
    in_sz = input_dim
    for _ in range(layers):
        key, k1, k2 = jax.random.split(key, 3)
        W = jax.random.uniform(k1, (in_sz, units), jnp.float32, -0.1, 0.1)
        b = jax.random.uniform(k2, (1, units), jnp.float32, -0.1, 0.1)
        params.append((W, b))
        in_sz = units
    key, k1, k2 = jax.random.split(key, 3)
    W = jax.random.uniform(k1, (in_sz, output_dim), jnp.float32, -0.1, 0.1)
    b = jax.random.uniform(k2, (1, output_dim), jnp.float32, -0.1, 0.1)
    params.append((W, b))
    return params, key


if __name__ == "__main__":
    # Small shapes consistent with the module defaults.
    n, d, input_dim, hidden_layers, hidden_dim = 2, 8, 8, 3, 16

    key = jax.random.PRNGKey(0)
    key, kx, kw = jax.random.split(key, 3)
    x = jax.random.normal(kx, (n, d, input_dim), jnp.float32)
    w = jax.random.uniform(kw, (d, d), jnp.float32, -0.1, 0.1)

    enc_params, key = _make_mlp_params(key, input_dim, hidden_layers,
                                       hidden_dim, hidden_dim)
    dec_params, key = _make_mlp_params(key, hidden_dim, hidden_layers,
                                       hidden_dim, input_dim)

    # samples_per_tile=1 -> grid of 2 row tiles: exercises the streaming /
    # loss-accumulation path even at this toy size.
    loss, w_adj = autoencoder_forward(x, w, enc_params, dec_params,
                                      samples_per_tile=1)
    loss = jax.block_until_ready(loss)
    w_adj = jax.block_until_ready(w_adj)

    ref_loss, ref_w_adj = _reference(x, w, enc_params, dec_params)
    assert jnp.allclose(loss, ref_loss, rtol=1e-5, atol=1e-4), (loss, ref_loss)
    assert jnp.allclose(w_adj, ref_w_adj, rtol=1e-6, atol=1e-6)

    print("KERNEL_OK")
</pallas_src>

<mosaic_0001>
module attributes {stable_mosaic.version = 11 : i64} {
  func.func @_autoencoder_kernel(%arg0: i32, %arg1: memref<8x128xf32, #tpu.memory_space<vmem>>, %arg2: memref<8x8xf32, #tpu.memory_space<vmem>>, %arg3: memref<128x128xf32, #tpu.memory_space<vmem>>, %arg4: memref<1x128xf32, #tpu.memory_space<vmem>>, %arg5: memref<6x128x128xf32, #tpu.memory_space<vmem>>, %arg6: memref<6x1x128xf32, #tpu.memory_space<vmem>>, %arg7: memref<128x128xf32, #tpu.memory_space<vmem>>, %arg8: memref<1x128xf32, #tpu.memory_space<vmem>>, %arg9: memref<1x1xf32, #tpu.memory_space<smem>>, %arg10: memref<1x1xf32, #tpu.memory_space<smem>>) attributes {dimension_semantics = [#tpu.dimension_semantics<arbitrary>], iteration_bounds = array<i64: 2>, scalar_prefetch = 0 : i64, scratch_operands = 1 : i64, tpu.core_type = #tpu.core_type<tc>, window_params = [{transform_indices = @transform_0, window_bounds = array<i64: 8, 128>}, {pipeline_mode = #tpu.pipeline_mode<synchronous>, transform_indices = @transform_1, window_bounds = array<i64: 8, 8>}, {pipeline_mode = #tpu.pipeline_mode<synchronous>, transform_indices = @transform_2, window_bounds = array<i64: 128, 128>}, {pipeline_mode = #tpu.pipeline_mode<synchronous>, transform_indices = @transform_3, window_bounds = array<i64: 1, 128>}, {pipeline_mode = #tpu.pipeline_mode<synchronous>, transform_indices = @transform_4, window_bounds = array<i64: 6, 128, 128>}, {pipeline_mode = #tpu.pipeline_mode<synchronous>, transform_indices = @transform_5, window_bounds = array<i64: 6, 1, 128>}, {pipeline_mode = #tpu.pipeline_mode<synchronous>, transform_indices = @transform_6, window_bounds = array<i64: 128, 128>}, {pipeline_mode = #tpu.pipeline_mode<synchronous>, transform_indices = @transform_7, window_bounds = array<i64: 1, 128>}, {transform_indices = @transform_8, window_bounds = array<i64: 1, 1>}]} {
    %c0 = arith.constant 0 : index
    %c0_0 = arith.constant 0 : index
    %0 = vector.load %arg1[%c0, %c0_0] : memref<8x128xf32, #tpu.memory_space<vmem>>, vector<8x128xf32>
    %c0_1 = arith.constant 0 : index
    %c0_2 = arith.constant 0 : index
    %1 = vector.load %arg3[%c0_1, %c0_2] : memref<128x128xf32, #tpu.memory_space<vmem>>, vector<128x128xf32>
    %cst = arith.constant dense<0.000000e+00> : vector<8x128xf32>
    %2 = tpu.matmul %0, %1, %cst {dimension_numbers = #tpu.dot_dimension_numbers<[1], [0], [0], [1], [0, 0, 1, 1], [], []>} : vector<8x128xf32>, vector<128x128xf32>, vector<8x128xf32> -> vector<8x128xf32>
    %c0_3 = arith.constant 0 : index
    %c0_4 = arith.constant 0 : index
    %3 = vector.load %arg4[%c0_3, %c0_4] : memref<1x128xf32, #tpu.memory_space<vmem>>, vector<1x128xf32>
    %4 = vector.broadcast %3 : vector<1x128xf32> to vector<8x128xf32>
    %5 = arith.addf %2, %4 : vector<8x128xf32>
    %cst_5 = arith.constant 0.000000e+00 : f32
    %6 = vector.broadcast %cst_5 : f32 to vector<8x128xf32>
    %7 = arith.maximumf %5, %6 : vector<8x128xf32>
    %c0_6 = arith.constant 0 : index
    %c0_7 = arith.constant 0 : index
    %c0_8 = arith.constant 0 : index
    %8 = vector.load %arg5[%c0_6, %c0_7, %c0_8] : memref<6x128x128xf32, #tpu.memory_space<vmem>>, vector<1x128x128xf32>
    %9 = vector.shape_cast %8 : vector<1x128x128xf32> to vector<128x128xf32>
    %cst_9 = arith.constant dense<0.000000e+00> : vector<8x128xf32>
    %10 = tpu.matmul %7, %9, %cst_9 {dimension_numbers = #tpu.dot_dimension_numbers<[1], [0], [0], [1], [0, 0, 1, 1], [], []>} : vector<8x128xf32>, vector<128x128xf32>, vector<8x128xf32> -> vector<8x128xf32>
    %c0_10 = arith.constant 0 : index
    %c0_11 = arith.constant 0 : index
    %c0_12 = arith.constant 0 : index
    %11 = vector.load %arg6[%c0_10, %c0_11, %c0_12] : memref<6x1x128xf32, #tpu.memory_space<vmem>>, vector<1x1x128xf32>
    %12 = vector.shape_cast %11 : vector<1x1x128xf32> to vector<1x128xf32>
    %13 = vector.broadcast %12 : vector<1x128xf32> to vector<8x128xf32>
    %14 = arith.addf %10, %13 : vector<8x128xf32>
    %cst_13 = arith.constant 0.000000e+00 : f32
    %15 = vector.broadcast %cst_13 : f32 to vector<8x128xf32>
    %16 = arith.maximumf %14, %15 : vector<8x128xf32>
    %c1 = arith.constant 1 : index
    %c0_14 = arith.constant 0 : index
    %c0_15 = arith.constant 0 : index
    %17 = vector.load %arg5[%c1, %c0_14, %c0_15] : memref<6x128x128xf32, #tpu.memory_space<vmem>>, vector<1x128x128xf32>
    %18 = vector.shape_cast %17 : vector<1x128x128xf32> to vector<128x128xf32>
    %cst_16 = arith.constant dense<0.000000e+00> : vector<8x128xf32>
    %19 = tpu.matmul %16, %18, %cst_16 {dimension_numbers = #tpu.dot_dimension_numbers<[1], [0], [0], [1], [0, 0, 1, 1], [], []>} : vector<8x128xf32>, vector<128x128xf32>, vector<8x128xf32> -> vector<8x128xf32>
    %c1_17 = arith.constant 1 : index
    %c0_18 = arith.constant 0 : index
    %c0_19 = arith.constant 0 : index
    %20 = vector.load %arg6[%c1_17, %c0_18, %c0_19] : memref<6x1x128xf32, #tpu.memory_space<vmem>>, vector<1x1x128xf32>
    %21 = vector.shape_cast %20 : vector<1x1x128xf32> to vector<1x128xf32>
    %22 = vector.broadcast %21 : vector<1x128xf32> to vector<8x128xf32>
    %23 = arith.addf %19, %22 : vector<8x128xf32>
    %cst_20 = arith.constant 0.000000e+00 : f32
    %24 = vector.broadcast %cst_20 : f32 to vector<8x128xf32>
    %25 = arith.maximumf %23, %24 : vector<8x128xf32>
    %c2 = arith.constant 2 : index
    %c0_21 = arith.constant 0 : index
    %c0_22 = arith.constant 0 : index
    %26 = vector.load %arg5[%c2, %c0_21, %c0_22] : memref<6x128x128xf32, #tpu.memory_space<vmem>>, vector<1x128x128xf32>
    %27 = vector.shape_cast %26 : vector<1x128x128xf32> to vector<128x128xf32>
    %cst_23 = arith.constant dense<0.000000e+00> : vector<8x128xf32>
    %28 = tpu.matmul %25, %27, %cst_23 {dimension_numbers = #tpu.dot_dimension_numbers<[1], [0], [0], [1], [0, 0, 1, 1], [], []>} : vector<8x128xf32>, vector<128x128xf32>, vector<8x128xf32> -> vector<8x128xf32>
    %c2_24 = arith.constant 2 : index
    %c0_25 = arith.constant 0 : index
    %c0_26 = arith.constant 0 : index
    %29 = vector.load %arg6[%c2_24, %c0_25, %c0_26] : memref<6x1x128xf32, #tpu.memory_space<vmem>>, vector<1x1x128xf32>
    %30 = vector.shape_cast %29 : vector<1x1x128xf32> to vector<1x128xf32>
    %31 = vector.broadcast %30 : vector<1x128xf32> to vector<8x128xf32>
    %32 = arith.addf %28, %31 : vector<8x128xf32>
    %33 = vector.shape_cast %32 : vector<8x128xf32> to vector<1x8x128xf32>
    %c0_27 = arith.constant 0 : index
    %c0_28 = arith.constant 0 : index
    %34 = vector.load %arg2[%c0_27, %c0_28] : memref<8x8xf32, #tpu.memory_space<vmem>>, vector<8x8xf32>
    %35 = vector.shape_cast %34 : vector<8x8xf32> to vector<1x8x8xf32>
    %cst_29 = arith.constant dense<0.000000e+00> : vector<1x8x128xf32>
    %36 = tpu.matmul %35, %33, %cst_29 {dimension_numbers = #tpu.dot_dimension_numbers<[2], [1], [1], [2], [0, 0, 0, 1, 1, 2], [0], [0]>} : vector<1x8x8xf32>, vector<1x8x128xf32>, vector<1x8x128xf32> -> vector<1x8x128xf32>
    %37 = vector.shape_cast %36 : vector<1x8x128xf32> to vector<8x128xf32>
    %c3 = arith.constant 3 : index
    %c0_30 = arith.constant 0 : index
    %c0_31 = arith.constant 0 : index
    %38 = vector.load %arg5[%c3, %c0_30, %c0_31] : memref<6x128x128xf32, #tpu.memory_space<vmem>>, vector<1x128x128xf32>
    %39 = vector.shape_cast %38 : vector<1x128x128xf32> to vector<128x128xf32>
    %cst_32 = arith.constant dense<0.000000e+00> : vector<8x128xf32>
    %40 = tpu.matmul %37, %39, %cst_32 {dimension_numbers = #tpu.dot_dimension_numbers<[1], [0], [0], [1], [0, 0, 1, 1], [], []>} : vector<8x128xf32>, vector<128x128xf32>, vector<8x128xf32> -> vector<8x128xf32>
    %c3_33 = arith.constant 3 : index
    %c0_34 = arith.constant 0 : index
    %c0_35 = arith.constant 0 : index
    %41 = vector.load %arg6[%c3_33, %c0_34, %c0_35] : memref<6x1x128xf32, #tpu.memory_space<vmem>>, vector<1x1x128xf32>
    %42 = vector.shape_cast %41 : vector<1x1x128xf32> to vector<1x128xf32>
    %43 = vector.broadcast %42 : vector<1x128xf32> to vector<8x128xf32>
    %44 = arith.addf %40, %43 : vector<8x128xf32>
    %cst_36 = arith.constant 0.000000e+00 : f32
    %45 = vector.broadcast %cst_36 : f32 to vector<8x128xf32>
    %46 = arith.maximumf %44, %45 : vector<8x128xf32>
    %c4 = arith.constant 4 : index
    %c0_37 = arith.constant 0 : index
    %c0_38 = arith.constant 0 : index
    %47 = vector.load %arg5[%c4, %c0_37, %c0_38] : memref<6x128x128xf32, #tpu.memory_space<vmem>>, vector<1x128x128xf32>
    %48 = vector.shape_cast %47 : vector<1x128x128xf32> to vector<128x128xf32>
    %cst_39 = arith.constant dense<0.000000e+00> : vector<8x128xf32>
    %49 = tpu.matmul %46, %48, %cst_39 {dimension_numbers = #tpu.dot_dimension_numbers<[1], [0], [0], [1], [0, 0, 1, 1], [], []>} : vector<8x128xf32>, vector<128x128xf32>, vector<8x128xf32> -> vector<8x128xf32>
    %c4_40 = arith.constant 4 : index
    %c0_41 = arith.constant 0 : index
    %c0_42 = arith.constant 0 : index
    %50 = vector.load %arg6[%c4_40, %c0_41, %c0_42] : memref<6x1x128xf32, #tpu.memory_space<vmem>>, vector<1x1x128xf32>
    %51 = vector.shape_cast %50 : vector<1x1x128xf32> to vector<1x128xf32>
    %52 = vector.broadcast %51 : vector<1x128xf32> to vector<8x128xf32>
    %53 = arith.addf %49, %52 : vector<8x128xf32>
    %cst_43 = arith.constant 0.000000e+00 : f32
    %54 = vector.broadcast %cst_43 : f32 to vector<8x128xf32>
    %55 = arith.maximumf %53, %54 : vector<8x128xf32>
    %c5 = arith.constant 5 : index
    %c0_44 = arith.constant 0 : index
    %c0_45 = arith.constant 0 : index
    %56 = vector.load %arg5[%c5, %c0_44, %c0_45] : memref<6x128x128xf32, #tpu.memory_space<vmem>>, vector<1x128x128xf32>
    %57 = vector.shape_cast %56 : vector<1x128x128xf32> to vector<128x128xf32>
    %cst_46 = arith.constant dense<0.000000e+00> : vector<8x128xf32>
    %58 = tpu.matmul %55, %57, %cst_46 {dimension_numbers = #tpu.dot_dimension_numbers<[1], [0], [0], [1], [0, 0, 1, 1], [], []>} : vector<8x128xf32>, vector<128x128xf32>, vector<8x128xf32> -> vector<8x128xf32>
    %c5_47 = arith.constant 5 : index
    %c0_48 = arith.constant 0 : index
    %c0_49 = arith.constant 0 : index
    %59 = vector.load %arg6[%c5_47, %c0_48, %c0_49] : memref<6x1x128xf32, #tpu.memory_space<vmem>>, vector<1x1x128xf32>
    %60 = vector.shape_cast %59 : vector<1x1x128xf32> to vector<1x128xf32>
    %61 = vector.broadcast %60 : vector<1x128xf32> to vector<8x128xf32>
    %62 = arith.addf %58, %61 : vector<8x128xf32>
    %cst_50 = arith.constant 0.000000e+00 : f32
    %63 = vector.broadcast %cst_50 : f32 to vector<8x128xf32>
    %64 = arith.maximumf %62, %63 : vector<8x128xf32>
    %c0_51 = arith.constant 0 : index
    %c0_52 = arith.constant 0 : index
    %65 = vector.load %arg7[%c0_51, %c0_52] : memref<128x128xf32, #tpu.memory_space<vmem>>, vector<128x128xf32>
    %cst_53 = arith.constant dense<0.000000e+00> : vector<8x128xf32>
    %66 = tpu.matmul %64, %65, %cst_53 {dimension_numbers = #tpu.dot_dimension_numbers<[1], [0], [0], [1], [0, 0, 1, 1], [], []>} : vector<8x128xf32>, vector<128x128xf32>, vector<8x128xf32> -> vector<8x128xf32>
    %c0_54 = arith.constant 0 : index
    %c0_55 = arith.constant 0 : index
    %67 = vector.load %arg8[%c0_54, %c0_55] : memref<1x128xf32, #tpu.memory_space<vmem>>, vector<1x128xf32>
    %68 = vector.broadcast %67 : vector<1x128xf32> to vector<8x128xf32>
    %69 = arith.addf %66, %68 : vector<8x128xf32>
    %70 = arith.subf %0, %69 : vector<8x128xf32>
    %c0_i32 = arith.constant 0 : i32
    %71 = arith.cmpi eq, %arg0, %c0_i32 : i32
    %72 = arith.extui %71 : i1 to i32
    %c0_i32_56 = arith.constant 0 : i32
    %73 = arith.cmpi ne, %72, %c0_i32_56 : i32
    scf.if %73 {
      %cst_63 = arith.constant 0.000000e+00 : f32
      %c0_64 = arith.constant 0 : index
      %c0_65 = arith.constant 0 : index
      %85 = memref.load %arg10[%c0_64, %c0_65] : memref<1x1xf32, #tpu.memory_space<smem>>
      memref.store %cst_63, %arg10[%c0_64, %c0_65] : memref<1x1xf32, #tpu.memory_space<smem>>
    } else {
    }
    %c0_57 = arith.constant 0 : index
    %c0_58 = arith.constant 0 : index
    %74 = memref.load %arg10[%c0_57, %c0_58] : memref<1x1xf32, #tpu.memory_space<smem>>
    %75 = arith.mulf %70, %70 : vector<8x128xf32>
    %76 = vector.shape_cast %75 : vector<8x128xf32> to vector<1x8x128xf32>
    %cst_59 = arith.constant dense<0.000000e+00> : vector<1xf32>
    %77 = vector.multi_reduction <add>, %76, %cst_59 [1, 2] : vector<1x8x128xf32> to vector<1xf32>
    %78 = vector.shape_cast %77 : vector<1xf32> to vector<1x1x1xf32>
    %79 = vector.extract %78[0, 0, 0] : f32 from vector<1x1x1xf32>
    %80 = arith.addf %74, %79 : f32
    %c0_60 = arith.constant 0 : index
    %c0_61 = arith.constant 0 : index
    %81 = memref.load %arg10[%c0_60, %c0_61] : memref<1x1xf32, #tpu.memory_space<smem>>
    memref.store %80, %arg10[%c0_60, %c0_61] : memref<1x1xf32, #tpu.memory_space<smem>>
    %c1_i32 = arith.constant 1 : i32
    %82 = arith.cmpi eq, %arg0, %c1_i32 : i32
    %83 = arith.extui %82 : i1 to i32
    %c0_i32_62 = arith.constant 0 : i32
    %84 = arith.cmpi ne, %83, %c0_i32_62 : i32
    scf.if %84 {
      %c0_63 = arith.constant 0 : index
      %c0_64 = arith.constant 0 : index
      %85 = memref.load %arg10[%c0_63, %c0_64] : memref<1x1xf32, #tpu.memory_space<smem>>
      %c0_65 = arith.constant 0 : index
      %c0_66 = arith.constant 0 : index
      %86 = memref.load %arg9[%c0_65, %c0_66] : memref<1x1xf32, #tpu.memory_space<smem>>
      memref.store %85, %arg9[%c0_65, %c0_66] : memref<1x1xf32, #tpu.memory_space<smem>>
    } else {
    }
    return
  }
  func.func @transform_0(%arg0: i32) -> (i32, i32) {
    %c0_i32 = arith.constant 0 : i32
    %c0_i32_0 = arith.constant 0 : i32
    return %arg0, %c0_i32 : i32, i32
  }
  func.func @transform_1(%arg0: i32) -> (i32, i32) {
    %c0_i32 = arith.constant 0 : i32
    %c0_i32_0 = arith.constant 0 : i32
    %c0_i32_1 = arith.constant 0 : i32
    return %c0_i32, %c0_i32_0 : i32, i32
  }
  func.func @transform_2(%arg0: i32) -> (i32, i32) {
    %c0_i32 = arith.constant 0 : i32
    %c0_i32_0 = arith.constant 0 : i32
    %c0_i32_1 = arith.constant 0 : i32
    return %c0_i32, %c0_i32_0 : i32, i32
  }
  func.func @transform_3(%arg0: i32) -> (i32, i32) {
    %c0_i32 = arith.constant 0 : i32
    %c0_i32_0 = arith.constant 0 : i32
    %c0_i32_1 = arith.constant 0 : i32
    return %c0_i32, %c0_i32_0 : i32, i32
  }
  func.func @transform_4(%arg0: i32) -> (i32, i32, i32) {
    %c0_i32 = arith.constant 0 : i32
    %c0_i32_0 = arith.constant 0 : i32
    %c0_i32_1 = arith.constant 0 : i32
    %c0_i32_2 = arith.constant 0 : i32
    return %c0_i32, %c0_i32_0, %c0_i32_1 : i32, i32, i32
  }
  func.func @transform_5(%arg0: i32) -> (i32, i32, i32) {
    %c0_i32 = arith.constant 0 : i32
    %c0_i32_0 = arith.constant 0 : i32
    %c0_i32_1 = arith.constant 0 : i32
    %c0_i32_2 = arith.constant 0 : i32
    return %c0_i32, %c0_i32_0, %c0_i32_1 : i32, i32, i32
  }
  func.func @transform_6(%arg0: i32) -> (i32, i32) {
    %c0_i32 = arith.constant 0 : i32
    %c0_i32_0 = arith.constant 0 : i32
    %c0_i32_1 = arith.constant 0 : i32
    return %c0_i32, %c0_i32_0 : i32, i32
  }
  func.func @transform_7(%arg0: i32) -> (i32, i32) {
    %c0_i32 = arith.constant 0 : i32
    %c0_i32_0 = arith.constant 0 : i32
    %c0_i32_1 = arith.constant 0 : i32
    return %c0_i32, %c0_i32_0 : i32, i32
  }
  func.func @transform_8(%arg0: i32) -> (i32, i32) {
    %c0_i32 = arith.constant 0 : i32
    %c0_i32_0 = arith.constant 0 : i32
    %c0_i32_1 = arith.constant 0 : i32
    return %c0_i32, %c0_i32_0 : i32, i32
  }
}

</mosaic_0001>

<llo_original>
// kernel: tpu_custom_call.1
$region0: #{tpu_custom_call.1}
  #allocation0 [shape = 'u32[]', space=smem, size = 0x4, offset = 0x4, fixed_abs, tag = 'smem constant byte address 0x4 - core index']
  #allocation1 [shape = 'u32[72,128]{1,0:T(1,128)}', space=vmem, size = 0x9000, scoped, tag = 'internal scratch']
  #allocation2 [shape = 'f32[1,1]{1,0:T(1,128)}', space=smem, size = 0x200, scoped, tag = 'scratch operand']
  %s0 = inlined_call_operand.hbm [shape: f32[16,128], index: 0, kind: input, shape index: {}]
  %s1 = inlined_call_operand.hbm [shape: f32[8,8], index: 1, kind: input, shape index: {}]
  %s2 = inlined_call_operand.hbm [shape: f32[128,128], index: 2, kind: input, shape index: {}]
  %s3 = inlined_call_operand.vmem [shape: f32[1,128], index: 3, kind: input, shape index: {}]
  %s4 = inlined_call_operand.hbm [shape: f32[6,128,128], index: 4, kind: input, shape index: {}]
  %s5 = inlined_call_operand.hbm [shape: f32[6,1,128], index: 5, kind: input, shape index: {}]
  %s6 = inlined_call_operand.hbm [shape: f32[128,128], index: 6, kind: input, shape index: {}]
  %s7 = inlined_call_operand.vmem [shape: f32[1,128], index: 7, kind: input, shape index: {}]
  %s8 = inlined_call_operand.hbm [shape: f32[1,1], index: 8, kind: output, shape index: {}]
  %s9 = sld [smem:[#allocation0]]
  $region97: #{tpu_custom_call.1} parent=0
    _
  %s11 = ssub.s32 1, %s9
  %s12 = scalar_select 0, %s11, %s9
  $region1: #{tpu_custom_call.1} parent=0
    #allocation3 [shape = 'u8[8192]{0}', space=vmem, size = 0x2000, scoped, tag = 'input window, operand 0']
    #allocation4 [shape = 's32[2]{0}', space=sflag, size = 0x8, scoped, tag = 'scoped memory for tpu_custom_call.1']
    #allocation5 [shape = 's32[2]{0}', space=sflag, size = 0x8, scoped, tag = 'scoped memory for tpu_custom_call.1']
    #allocation6 [shape = 'u8[4096]{0}', space=vmem, size = 0x1000, scoped, tag = 'input window, operand 1, single buffered']
    #allocation7 [shape = 's32[1]{0}', space=sflag, size = 0x4, scoped, tag = 'scoped memory for tpu_custom_call.1']
    #allocation8 [shape = 'u8[65536]{0}', space=vmem, size = 0x10000, scoped, tag = 'input window, operand 2, single buffered']
    #allocation9 [shape = 'u8[393216]{0}', space=vmem, size = 0x60000, scoped, tag = 'input window, operand 4, single buffered']
    #allocation10 [shape = 's32[1]{0}', space=sflag, size = 0x4, scoped, tag = 'scoped memory for tpu_custom_call.1']
    #allocation11 [shape = 'u8[3072]{0}', space=vmem, size = 0xc00, scoped, tag = 'input window, operand 5, single buffered']
    #allocation12 [shape = 'u8[65536]{0}', space=vmem, size = 0x10000, scoped, tag = 'input window, operand 6, single buffered']
    #allocation13 [shape = 's32[1]{0}', space=sflag, size = 0x4, scoped, tag = 'scoped memory for tpu_custom_call.1']
    #allocation14 [shape = 'u8[512]{0}', space=smem, size = 0x200, scoped, tag = 'output window, operand 0, single buffered']
    %13 = vsyncpa [#allocation4], 0
    %s14 = scalar_lea.sflag [#allocation4], 1
    %15 = vsyncpa %s14, 0
    %16 = vsyncpa [#allocation7], 0
    %17 = vsyncpa [#allocation10], 0
    %18 = vsyncpa [#allocation13], 0
    %19 = vsyncpa [#allocation5], 0
    loop: start=0, step=1, limit=4
    $region2: #{tpu_custom_call.1} parent=1 // loop_pre_header
      _
    $region3: #{tpu_custom_call.1} parent=1 // loop_header
      %s21 = sphi 0, %s25
      %p22 = scmp.ge.s32.totalorder %s21, 4
      %s31 = sphi 0, %s33
      %s34 = sphi 0, %s31
      %s35 = sphi 0, %s34
      %s51 = sphi 0, %s35
      %s55 = sphi 0, %s55
      %s57 = sphi 0, %s55
      %s58 = sphi 0, %s57
      %s72 = sphi 0, %s58
      %s76 = sphi 0, %s76
      %s78 = sphi 0, %s76
      %s79 = sphi 0, %s78
      %s93 = sphi 0, %s79
      %s97 = sphi 0, %s97
      %s99 = sphi 0, %s97
      %s100 = sphi 0, %s99
      %s114 = sphi 0, %s100
      %s118 = sphi 0, %s118
      %s120 = sphi 0, %s118
      %s121 = sphi 0, %s120
      %s135 = sphi 0, %s121
      %s139 = sphi 0, %s139
      %s141 = sphi 0, %s139
      %s142 = sphi 0, %s141
      %s156 = sphi 0, %s142
      %s160 = sphi 0, %s160
      %s162 = sphi 0, %s160
      %s163 = sphi 0, %s162
      %s177 = sphi 0, %s163
      %s181 = sphi 0, %s181
      %s183 = sphi 0, %s181
      %s184 = sphi 0, %s183
      %s198 = sphi 0, %s184
      %s202 = sphi 0, %s202
      %s204 = sphi 0, %s202
      %s205 = sphi 0, %s204
      %s219 = sphi 0, %s205
    $region4: #{tpu_custom_call.1} parent=1 // loop_header_branch
      %24 = sbr.rel (%p22) target = $region8
    $region5: #{tpu_custom_call.1} parent=1 // loop_body
      %s26 = ssub.s32 %s21, 1
      %s27 = ssub.s32 %s21, 2
      %s28 = sadd.s32 %s21, 1
      %s29 = ssub.s32 %s21, %s28
      %p30 = scmp.eq.s32.totalorder %s29, 0
      %s32 = sadd.s32 %s31, 1
      %s33 = scalar_select %p30, %s31, %s32
      %p36 = pneg %p30
      %p37 = scmp.eq.s32.totalorder %s21, 1
      %p38 = por %p36, %p37
      %p39 = scmp.ne.s32.totalorder %s31, %s34
      %p40 = scmp.eq.s32.totalorder %s21, 0
      %p41 = por %p39, %p40
      %p42 = scmp.ne.s32.totalorder %s31, %s34
      %p43 = scmp.eq.s32.totalorder %s26, 1
      %p44 = por %p42, %p43
      %p45 = scmp.ne.s32.totalorder %s34, %s35
      %p46 = scmp.eq.s32.totalorder %s26, 0
      %p47 = por %p45, %p46
      %p48 = scmp.ne.s32.totalorder %s34, %s35
      %p49 = scmp.eq.s32.totalorder %s27, 1
      %p50 = por %p48, %p49
      %p52 = scmp.ne.s32.totalorder %s35, %s51
      %p53 = scmp.eq.s32.totalorder %s27, 0
      %p54 = por %p52, %p53
      %s56 = sadd.s32 %s55, 1
      %p59 = scmp.eq.s32.totalorder %s21, 1
      %p60 = scmp.ne.s32.totalorder %s55, %s57
      %p61 = scmp.eq.s32.totalorder %s21, 0
      %p62 = por %p60, %p61
      %p63 = scmp.ne.s32.totalorder %s55, %s57
      %p64 = scmp.eq.s32.totalorder %s26, 1
      %p65 = por %p63, %p64
      %p66 = scmp.ne.s32.totalorder %s57, %s58
      %p67 = scmp.eq.s32.totalorder %s26, 0
      %p68 = por %p66, %p67
      %p69 = scmp.ne.s32.totalorder %s57, %s58
      %p70 = scmp.eq.s32.totalorder %s27, 1
      %p71 = por %p69, %p70
      %p73 = scmp.ne.s32.totalorder %s58, %s72
      %p74 = scmp.eq.s32.totalorder %s27, 0
      %p75 = por %p73, %p74
      %s77 = sadd.s32 %s76, 1
      %p80 = scmp.eq.s32.totalorder %s21, 1
      %p81 = scmp.ne.s32.totalorder %s76, %s78
      %p82 = scmp.eq.s32.totalorder %s21, 0
      %p83 = por %p81, %p82
      %p84 = scmp.ne.s32.totalorder %s76, %s78
      %p85 = scmp.eq.s32.totalorder %s26, 1
      %p86 = por %p84, %p85
      %p87 = scmp.ne.s32.totalorder %s78, %s79
      %p88 = scmp.eq.s32.totalorder %s26, 0
      %p89 = por %p87, %p88
      %p90 = scmp.ne.s32.totalorder %s78, %s79
      %p91 = scmp.eq.s32.totalorder %s27, 1
      %p92 = por %p90, %p91
      %p94 = scmp.ne.s32.totalorder %s79, %s93
      %p95 = scmp.eq.s32.totalorder %s27, 0
      %p96 = por %p94, %p95
      %s98 = sadd.s32 %s97, 1
      %p101 = scmp.eq.s32.totalorder %s21, 1
      %p102 = scmp.ne.s32.totalorder %s97, %s99
      %p103 = scmp.eq.s32.totalorder %s21, 0
      %p104 = por %p102, %p103
      %p105 = scmp.ne.s32.totalorder %s97, %s99
      %p106 = scmp.eq.s32.totalorder %s26, 1
      %p107 = por %p105, %p106
      %p108 = scmp.ne.s32.totalorder %s99, %s100
      %p109 = scmp.eq.s32.totalorder %s26, 0
      %p110 = por %p108, %p109
      %p111 = scmp.ne.s32.totalorder %s99, %s100
      %p112 = scmp.eq.s32.totalorder %s27, 1
      %p113 = por %p111, %p112
      %p115 = scmp.ne.s32.totalorder %s100, %s114
      %p116 = scmp.eq.s32.totalorder %s27, 0
      %p117 = por %p115, %p116
      %s119 = sadd.s32 %s118, 1
      %p122 = scmp.eq.s32.totalorder %s21, 1
      %p123 = scmp.ne.s32.totalorder %s118, %s120
      %p124 = scmp.eq.s32.totalorder %s21, 0
      %p125 = por %p123, %p124
      %p126 = scmp.ne.s32.totalorder %s118, %s120
      %p127 = scmp.eq.s32.totalorder %s26, 1
      %p128 = por %p126, %p127
      %p129 = scmp.ne.s32.totalorder %s120, %s121
      %p130 = scmp.eq.s32.totalorder %s26, 0
      %p131 = por %p129, %p130
      %p132 = scmp.ne.s32.totalorder %s120, %s121
      %p133 = scmp.eq.s32.totalorder %s27, 1
      %p134 = por %p132, %p133
      %p136 = scmp.ne.s32.totalorder %s121, %s135
      %p137 = scmp.eq.s32.totalorder %s27, 0
      %p138 = por %p136, %p137
      %s140 = sadd.s32 %s139, 1
      %p143 = scmp.eq.s32.totalorder %s21, 1
      %p144 = scmp.ne.s32.totalorder %s139, %s141
      %p145 = scmp.eq.s32.totalorder %s21, 0
      %p146 = por %p144, %p145
      %p147 = scmp.ne.s32.totalorder %s139, %s141
      %p148 = scmp.eq.s32.totalorder %s26, 1
      %p149 = por %p147, %p148
      %p150 = scmp.ne.s32.totalorder %s141, %s142
      %p151 = scmp.eq.s32.totalorder %s26, 0
      %p152 = por %p150, %p151
      %p153 = scmp.ne.s32.totalorder %s141, %s142
      %p154 = scmp.eq.s32.totalorder %s27, 1
      %p155 = por %p153, %p154
      %p157 = scmp.ne.s32.totalorder %s142, %s156
      %p158 = scmp.eq.s32.totalorder %s27, 0
      %p159 = por %p157, %p158
      %s161 = sadd.s32 %s160, 1
      %p164 = scmp.eq.s32.totalorder %s21, 1
      %p165 = scmp.ne.s32.totalorder %s160, %s162
      %p166 = scmp.eq.s32.totalorder %s21, 0
      %p167 = por %p165, %p166
      %p168 = scmp.ne.s32.totalorder %s160, %s162
      %p169 = scmp.eq.s32.totalorder %s26, 1
      %p170 = por %p168, %p169
      %p171 = scmp.ne.s32.totalorder %s162, %s163
      %p172 = scmp.eq.s32.totalorder %s26, 0
      %p173 = por %p171, %p172
      %p174 = scmp.ne.s32.totalorder %s162, %s163
      %p175 = scmp.eq.s32.totalorder %s27, 1
      %p176 = por %p174, %p175
      %p178 = scmp.ne.s32.totalorder %s163, %s177
      %p179 = scmp.eq.s32.totalorder %s27, 0
      %p180 = por %p178, %p179
      %s182 = sadd.s32 %s181, 1
      %p185 = scmp.eq.s32.totalorder %s21, 1
      %p186 = scmp.ne.s32.totalorder %s181, %s183
      %p187 = scmp.eq.s32.totalorder %s21, 0
      %p188 = por %p186, %p187
      %p189 = scmp.ne.s32.totalorder %s181, %s183
      %p190 = scmp.eq.s32.totalorder %s26, 1
      %p191 = por %p189, %p190
      %p192 = scmp.ne.s32.totalorder %s183, %s184
      %p193 = scmp.eq.s32.totalorder %s26, 0
      %p194 = por %p192, %p193
      %p195 = scmp.ne.s32.totalorder %s183, %s184
      %p196 = scmp.eq.s32.totalorder %s27, 1
      %p197 = por %p195, %p196
      %p199 = scmp.ne.s32.totalorder %s184, %s198
      %p200 = scmp.eq.s32.totalorder %s27, 0
      %p201 = por %p199, %p200
      %s203 = sadd.s32 %s202, 1
      %p206 = scmp.eq.s32.totalorder %s21, 1
      %p207 = scmp.ne.s32.totalorder %s202, %s204
      %p208 = scmp.eq.s32.totalorder %s21, 0
      %p209 = por %p207, %p208
      %p210 = scmp.ne.s32.totalorder %s202, %s204
      %p211 = scmp.eq.s32.totalorder %s26, 1
      %p212 = por %p210, %p211
      %p213 = scmp.ne.s32.totalorder %s204, %s205
      %p214 = scmp.eq.s32.totalorder %s26, 0
      %p215 = por %p213, %p214
      %p216 = scmp.ne.s32.totalorder %s204, %s205
      %p217 = scmp.eq.s32.totalorder %s27, 1
      %p218 = por %p216, %p217
      %p220 = scmp.ne.s32.totalorder %s205, %s219
      %p221 = scmp.eq.s32.totalorder %s27, 0
      %p222 = por %p220, %p221
      %p223 = scmp.le.s32.totalorder 1, %s21
      %p224 = scmp.lt.s32.totalorder %s21, 3
      %p225 = pnand %p223, %p224
      %p226 = pneg %p225
      // Predicated region
      $region9: #{tpu_custom_call.1} parent=5 // pred_check
        _
      $region10: #{tpu_custom_call.1} parent=5 // pred_check_branch
        %228 = sbr.rel (%p225) target = $region12
      $region11: #{tpu_custom_call.1} parent=5 // pred_region
        %s229 = ssub.s32 %s21, 1
        // Predicated region
        $region13: #{tpu_custom_call.1} parent=11 // pred_check
          %p230 = pneg %p68
        $region14: #{tpu_custom_call.1} parent=11 // pred_check_branch
          %232 = sbr.rel (%p230) target = $region16
        $region15: #{tpu_custom_call.1} parent=11 // pred_region
          %234 = vsyncadd [#allocation7], 0
          %s236 = sshll.u32 %s1, 4
          %s237 = int_to_ptr.hbm [resolvable:$true] %s236
          %s238 = sshll.u32 [#allocation6], 4
          %s239 = int_to_ptr.vmem [resolvable:$true] %s238
          %241 = dma.hbm_to_vmem [thread:$0]  %s237, 128, %s239, [#allocation7]
        $region16: #{tpu_custom_call.1} parent=11 // pred_fallthru
          _
        // Predicated region
        $region17: #{tpu_custom_call.1} parent=11 // pred_check
          %p242 = pneg %p89
        $region18: #{tpu_custom_call.1} parent=11 // pred_check_branch
          %244 = sbr.rel (%p242) target = $region20
        $region19: #{tpu_custom_call.1} parent=11 // pred_region
          %246 = vsyncadd [#allocation7], 0
          %s247 = sshll.u32 %s2, 4
          %s248 = int_to_ptr.hbm [resolvable:$true] %s247
          %s249 = sshll.u32 [#allocation8], 4
          %s250 = int_to_ptr.vmem [resolvable:$true] %s249
          %255 = dma.hbm_to_vmem [thread:$0]  %s248, 2048, %s250, [#allocation7], 128, 128, 8
        $region20: #{tpu_custom_call.1} parent=11 // pred_fallthru
          _
        // Predicated region
        $region21: #{tpu_custom_call.1} parent=11 // pred_check
          %p256 = pneg %p110
        $region22: #{tpu_custom_call.1} parent=11 // pred_check_branch
          %258 = sbr.rel (%p256) target = $region24
        $region23: #{tpu_custom_call.1} parent=11 // pred_region
          _
        $region24: #{tpu_custom_call.1} parent=11 // pred_fallthru
          _
        // Predicated region
        $region25: #{tpu_custom_call.1} parent=11 // pred_check
          %p259 = pneg %p131
        $region26: #{tpu_custom_call.1} parent=11 // pred_check_branch
          %261 = sbr.rel (%p259) target = $region28
        $region27: #{tpu_custom_call.1} parent=11 // pred_region
          %263 = vsyncadd [#allocation10], 0
          %s264 = sshll.u32 %s4, 4
          %s265 = int_to_ptr.hbm [resolvable:$true] %s264
          %s266 = sshll.u32 [#allocation9], 4
          %s267 = int_to_ptr.vmem [resolvable:$true] %s266
          %272 = dma.hbm_to_vmem [thread:$0]  %s265, 12288, %s267, [#allocation10], 128, 128, 8
        $region28: #{tpu_custom_call.1} parent=11 // pred_fallthru
          _
        // Predicated region
        $region29: #{tpu_custom_call.1} parent=11 // pred_check
          %p273 = pneg %p152
        $region30: #{tpu_custom_call.1} parent=11 // pred_check_branch
          %275 = sbr.rel (%p273) target = $region32
        $region31: #{tpu_custom_call.1} parent=11 // pred_region
          %277 = vsyncadd [#allocation10], 0
          %s278 = sshll.u32 %s5, 4
          %s279 = int_to_ptr.hbm [resolvable:$true] %s278
          %s280 = sshll.u32 [#allocation11], 4
          %s281 = int_to_ptr.vmem [resolvable:$true] %s280
          %286 = dma.hbm_to_vmem [thread:$0]  %s279, 96, %s281, [#allocation10], 16, 16, 1
        $region32: #{tpu_custom_call.1} parent=11 // pred_fallthru
          _
        // Predicated region
        $region33: #{tpu_custom_call.1} parent=11 // pred_check
          %p287 = pneg %p173
        $region34: #{tpu_custom_call.1} parent=11 // pred_check_branch
          %289 = sbr.rel (%p287) target = $region36
        $region35: #{tpu_custom_call.1} parent=11 // pred_region
          %291 = vsyncadd [#allocation13], 0
          %s292 = sshll.u32 %s6, 4
          %s293 = int_to_ptr.hbm [resolvable:$true] %s292
          %s294 = sshll.u32 [#allocation12], 4
          %s295 = int_to_ptr.vmem [resolvable:$true] %s294
          %300 = dma.hbm_to_vmem [thread:$0]  %s293, 2048, %s295, [#allocation13], 128, 128, 8
        $region36: #{tpu_custom_call.1} parent=11 // pred_fallthru
          _
        // Predicated region
        $region37: #{tpu_custom_call.1} parent=11 // pred_check
          %p301 = pneg %p194
        $region38: #{tpu_custom_call.1} parent=11 // pred_check_branch
          %303 = sbr.rel (%p301) target = $region40
        $region39: #{tpu_custom_call.1} parent=11 // pred_region
          _
        $region40: #{tpu_custom_call.1} parent=11 // pred_fallthru
          _
      $region12: #{tpu_custom_call.1} parent=5 // pred_fallthru
        _
      %p304 = scmp.lt.s32.totalorder %s21, 2
      // Predicated region
      $region41: #{tpu_custom_call.1} parent=5 // pred_check
        %p305 = pneg %p304
      $region42: #{tpu_custom_call.1} parent=5 // pred_check_branch
        %307 = sbr.rel (%p305) target = $region44
      $region43: #{tpu_custom_call.1} parent=5 // pred_region
        // Predicated region
        $region45: #{tpu_custom_call.1} parent=43 // pred_check
          %p308 = pneg %p41
        $region46: #{tpu_custom_call.1} parent=43 // pred_check_branch
          %310 = sbr.rel (%p308) target = $region48
        $region47: #{tpu_custom_call.1} parent=43 // pred_region
          %s311 = sand.u32 %s31, 1
          %s312 = scalar_lea.sflag [#allocation4], %s311
          %s313 = sand.u32 %s31, 1
          %s314 = smul.addr %s313, 8
          %s315 = scalar_lea.vmem [#allocation3], %s314
          %317 = vsyncadd %s312, 0
          %s318 = smul.addr %s21, 8
          %s319 = scalar_lea.hbm %s0, %s318
          %s321 = sshll.u32 %s319, 4
          %s322 = int_to_ptr.hbm [resolvable:$true] %s321
          %s323 = sshll.u32 %s315, 4
          %s324 = int_to_ptr.vmem [resolvable:$true] %s323
          %326 = dma.hbm_to_vmem [thread:$0]  %s322, 128, %s324, %s312
        $region48: #{tpu_custom_call.1} parent=43 // pred_fallthru
          _
      $region44: #{tpu_custom_call.1} parent=5 // pred_fallthru
        _
      %p327 = scmp.le.s32.totalorder 1, %s21
      %p328 = scmp.lt.s32.totalorder %s21, 3
      %p329 = pnand %p327, %p328
      %p330 = pneg %p329
      // Predicated region
      $region49: #{tpu_custom_call.1} parent=5 // pred_check
        _
      $region50: #{tpu_custom_call.1} parent=5 // pred_check_branch
        %332 = sbr.rel (%p329) target = $region52
      $region51: #{tpu_custom_call.1} parent=5 // pred_region
        %s333 = ssub.s32 %s21, 1
        %s334 = sand.u32 %s34, 1
        %s335 = scalar_lea.sflag [#allocation4], %s334
        %s336 = sand.u32 %s34, 1
        %s337 = smul.addr %s336, 8
        %s338 = scalar_lea.vmem [#allocation3], %s337
        // Predicated region
        $region53: #{tpu_custom_call.1} parent=51 // pred_check
          %p339 = pneg %p47
        $region54: #{tpu_custom_call.1} parent=51 // pred_check_branch
          %341 = sbr.rel (%p339) target = $region56
        $region55: #{tpu_custom_call.1} parent=51 // pred_region
          %343 = dma.done %s335, 128
        $region56: #{tpu_custom_call.1} parent=51 // pred_fallthru
          _
        // Predicated region
        $region57: #{tpu_custom_call.1} parent=51 // pred_check
          %p344 = pneg %p68
        $region58: #{tpu_custom_call.1} parent=51 // pred_check_branch
          %346 = sbr.rel (%p344) target = $region60
        $region59: #{tpu_custom_call.1} parent=51 // pred_region
          %348 = dma.done [#allocation7], 128
        $region60: #{tpu_custom_call.1} parent=51 // pred_fallthru
          _
        // Predicated region
        $region61: #{tpu_custom_call.1} parent=51 // pred_check
          %p349 = pneg %p89
        $region62: #{tpu_custom_call.1} parent=51 // pred_check_branch
          %351 = sbr.rel (%p349) target = $region64
        $region63: #{tpu_custom_call.1} parent=51 // pred_region
          %353 = dma.done [#allocation7], 2048
        $region64: #{tpu_custom_call.1} parent=51 // pred_fallthru
          _
        // Predicated region
        $region65: #{tpu_custom_call.1} parent=51 // pred_check
          %p354 = pneg %p131
        $region66: #{tpu_custom_call.1} parent=51 // pred_check_branch
          %356 = sbr.rel (%p354) target = $region68
        $region67: #{tpu_custom_call.1} parent=51 // pred_region
          %358 = dma.done [#allocation10], 12288
        $region68: #{tpu_custom_call.1} parent=51 // pred_fallthru
          _
        // Predicated region
        $region69: #{tpu_custom_call.1} parent=51 // pred_check
          %p359 = pneg %p152
        $region70: #{tpu_custom_call.1} parent=51 // pred_check_branch
          %361 = sbr.rel (%p359) target = $region72
        $region71: #{tpu_custom_call.1} parent=51 // pred_region
          %363 = dma.done [#allocation10], 96
        $region72: #{tpu_custom_call.1} parent=51 // pred_fallthru
          _
        // Predicated region
        $region73: #{tpu_custom_call.1} parent=51 // pred_check
          %p364 = pneg %p173
        $region74: #{tpu_custom_call.1} parent=51 // pred_check_branch
          %366 = sbr.rel (%p364) target = $region76
        $region75: #{tpu_custom_call.1} parent=51 // pred_region
          %368 = dma.done [#allocation13], 2048
        $region76: #{tpu_custom_call.1} parent=51 // pred_fallthru
          _
        %s369 = sand.u32 %s34, 1
        %s370 = scalar_lea.sflag [#allocation4], %s369
        %s371 = sand.u32 %s34, 1
        %s372 = smul.addr %s371, 8
        %s373 = scalar_lea.vmem [#allocation3], %s372
        %p374 = pneg %p47
        %p375 = pneg %p44
        %p376 = pneg %p68
        %p377 = pneg %p65
        %p378 = pneg %p89
        %p379 = pneg %p86
        %p380 = pneg %p110
        %p381 = pneg %p107
        %p382 = pneg %p131
        %p383 = pneg %p128
        %p384 = pneg %p152
        %p385 = pneg %p149
        %p386 = pneg %p173
        %p387 = pneg %p170
        %p388 = pneg %p194
        %p389 = pneg %p191
        %p390 = pneg %p215
        %p391 = pneg %p212
        %v392 = vld [vmem:[%s338] sm:$0xff]
        %v393 = vld [vmem:[#allocation8] sm:$0xff]
        %v394 = vld [vmem:[#allocation8 + $0x8] sm:$0xff]
        %v395 = vld [vmem:[#allocation8 + $0x10] sm:$0xff]
        %v396 = vld [vmem:[#allocation8 + $0x18] sm:$0xff]
        %v397 = vld [vmem:[#allocation8 + $0x20] sm:$0xff]
        %v398 = vld [vmem:[#allocation8 + $0x28] sm:$0xff]
        %v399 = vld [vmem:[#allocation8 + $0x30] sm:$0xff]
        %v400 = vld [vmem:[#allocation8 + $0x38] sm:$0xff]
        %v401 = vld [vmem:[#allocation8 + $0x40] sm:$0xff]
        %v402 = vld [vmem:[#allocation8 + $0x48] sm:$0xff]
        %v403 = vld [vmem:[#allocation8 + $0x50] sm:$0xff]
        %v404 = vld [vmem:[#allocation8 + $0x58] sm:$0xff]
        %v405 = vld [vmem:[#allocation8 + $0x60] sm:$0xff]
        %v406 = vld [vmem:[#allocation8 + $0x68] sm:$0xff]
        %v407 = vld [vmem:[#allocation8 + $0x70] sm:$0xff]
        %v408 = vld [vmem:[#allocation8 + $0x78] sm:$0xff]
        %v409 = vld [vmem:[%s3] sm:$0x1]
        %v411 = vperm.slane %v409, 0
        %413 = vmatpush.msra.mxu0 %v408
        %414 = vmatpush.msra.mxu0 %v407
        %415 = vmatpush.msra.mxu0 %v406
        %416 = vmatpush.msra.mxu0 %v405
        %417 = vmatpush.msra.mxu0 %v404
        %418 = vmatpush.msra.mxu0 %v403
        %419 = vmatpush.msra.mxu0 %v402
        %420 = vmatpush.msra.mxu0 %v401
        %421 = vmatpush.msra.mxu0 %v400
        %422 = vmatpush.msra.mxu0 %v399
        %423 = vmatpush.msra.mxu0 %v398
        %424 = vmatpush.msra.mxu0 %v397
        %425 = vmatpush.msra.mxu0 %v396
        %426 = vmatpush.msra.mxu0 %v395
        %427 = vmatpush.msra.mxu0 %v394
        %428 = vmatpush.msra.mxu0 %v393
        %429 = vmatmul.f32.gmra.mxu0 %v392
        %v430 = vpop.f32.mrf.mxu0
        %v431 = vadd.f32 %v411, %v430
        %432 = vdwg.mxu0
        %v433 = vmax.f32 %v431, 0.0
        %v434 = vld [vmem:[#allocation9] sm:$0xff]
        %v435 = vld [vmem:[#allocation9 + $0x8] sm:$0xff]
        %v436 = vld [vmem:[#allocation9 + $0x10] sm:$0xff]
        %v437 = vld [vmem:[#allocation9 + $0x18] sm:$0xff]
        %v438 = vld [vmem:[#allocation9 + $0x20] sm:$0xff]
        %v439 = vld [vmem:[#allocation9 + $0x28] sm:$0xff]
        %v440 = vld [vmem:[#allocation9 + $0x30] sm:$0xff]
        %v441 = vld [vmem:[#allocation9 + $0x38] sm:$0xff]
        %v442 = vld [vmem:[#allocation9 + $0x40] sm:$0xff]
        %v443 = vld [vmem:[#allocation9 + $0x48] sm:$0xff]
        %v444 = vld [vmem:[#allocation9 + $0x50] sm:$0xff]
        %v445 = vld [vmem:[#allocation9 + $0x58] sm:$0xff]
        %v446 = vld [vmem:[#allocation9 + $0x60] sm:$0xff]
        %v447 = vld [vmem:[#allocation9 + $0x68] sm:$0xff]
        %v448 = vld [vmem:[#allocation9 + $0x70] sm:$0xff]
        %v449 = vld [vmem:[#allocation9 + $0x78] sm:$0xff]
        %v450 = vld [vmem:[#allocation11] sm:$0x1]
        %v452 = vperm.slane %v450, 0
        %454 = vmatpush.msra.mxu0 %v449
        %455 = vmatpush.msra.mxu0 %v448
        %456 = vmatpush.msra.mxu0 %v447
        %457 = vmatpush.msra.mxu0 %v446
        %458 = vmatpush.msra.mxu0 %v445
        %459 = vmatpush.msra.mxu0 %v444
        %460 = vmatpush.msra.mxu0 %v443
        %461 = vmatpush.msra.mxu0 %v442
        %462 = vmatpush.msra.mxu0 %v441
        %463 = vmatpush.msra.mxu0 %v440
        %464 = vmatpush.msra.mxu0 %v439
        %465 = vmatpush.msra.mxu0 %v438
        %466 = vmatpush.msra.mxu0 %v437
        %467 = vmatpush.msra.mxu0 %v436
        %468 = vmatpush.msra.mxu0 %v435
        %469 = vmatpush.msra.mxu0 %v434
        %470 = vmatmul.f32.gmra.mxu0 %v433
        %v471 = vpop.f32.mrf.mxu0
        %v472 = vadd.f32 %v452, %v471
        %473 = vdwg.mxu0
        %v474 = vmax.f32 %v472, 0.0
        %s475 = scalar_lea.vmem [#allocation9], 128
        %v476 = vld [vmem:[%s475] sm:$0xff]
        %v477 = vld [vmem:[%s475 + $0x8] sm:$0xff]
        %v478 = vld [vmem:[%s475 + $0x10] sm:$0xff]
        %v479 = vld [vmem:[%s475 + $0x18] sm:$0xff]
        %v480 = vld [vmem:[%s475 + $0x20] sm:$0xff]
        %v481 = vld [vmem:[%s475 + $0x28] sm:$0xff]
        %v482 = vld [vmem:[%s475 + $0x30] sm:$0xff]
        %v483 = vld [vmem:[%s475 + $0x38] sm:$0xff]
        %v484 = vld [vmem:[%s475 + $0x40] sm:$0xff]
        %v485 = vld [vmem:[%s475 + $0x48] sm:$0xff]
        %v486 = vld [vmem:[%s475 + $0x50] sm:$0xff]
        %v487 = vld [vmem:[%s475 + $0x58] sm:$0xff]
        %v488 = vld [vmem:[%s475 + $0x60] sm:$0xff]
        %v489 = vld [vmem:[%s475 + $0x68] sm:$0xff]
        %v490 = vld [vmem:[%s475 + $0x70] sm:$0xff]
        %v491 = vld [vmem:[%s475 + $0x78] sm:$0xff]
        %s492 = scalar_lea.vmem [#allocation11], 1
        %v493 = vld [vmem:[%s492] sm:$0x1]
        %v495 = vperm.slane %v493, 0
        %497 = vmatpush.msra.mxu0 %v491
        %498 = vmatpush.msra.mxu0 %v490
        %499 = vmatpush.msra.mxu0 %v489
        %500 = vmatpush.msra.mxu0 %v488
        %501 = vmatpush.msra.mxu0 %v487
        %502 = vmatpush.msra.mxu0 %v486
        %503 = vmatpush.msra.mxu0 %v485
        %504 = vmatpush.msra.mxu0 %v484
        %505 = vmatpush.msra.mxu0 %v483
        %506 = vmatpush.msra.mxu0 %v482
        %507 = vmatpush.msra.mxu0 %v481
        %508 = vmatpush.msra.mxu0 %v480
        %509 = vmatpush.msra.mxu0 %v479
        %510 = vmatpush.msra.mxu0 %v478
        %511 = vmatpush.msra.mxu0 %v477
        %512 = vmatpush.msra.mxu0 %v476
        %513 = vmatmul.f32.gmra.mxu0 %v474
        %v514 = vpop.f32.mrf.mxu0
        %v515 = vadd.f32 %v495, %v514
        %516 = vdwg.mxu0
        %v517 = vmax.f32 %v515, 0.0
        %s518 = scalar_lea.vmem [#allocation9], 256
        %v519 = vld [vmem:[%s518] sm:$0xff]
        %v520 = vld [vmem:[%s518 + $0x8] sm:$0xff]
        %v521 = vld [vmem:[%s518 + $0x10] sm:$0xff]
        %v522 = vld [vmem:[%s518 + $0x18] sm:$0xff]
        %v523 = vld [vmem:[%s518 + $0x20] sm:$0xff]
        %v524 = vld [vmem:[%s518 + $0x28] sm:$0xff]
        %v525 = vld [vmem:[%s518 + $0x30] sm:$0xff]
        %v526 = vld [vmem:[%s518 + $0x38] sm:$0xff]
        %v527 = vld [vmem:[%s518 + $0x40] sm:$0xff]
        %v528 = vld [vmem:[%s518 + $0x48] sm:$0xff]
        %v529 = vld [vmem:[%s518 + $0x50] sm:$0xff]
        %v530 = vld [vmem:[%s518 + $0x58] sm:$0xff]
        %v531 = vld [vmem:[%s518 + $0x60] sm:$0xff]
        %v532 = vld [vmem:[%s518 + $0x68] sm:$0xff]
        %v533 = vld [vmem:[%s518 + $0x70] sm:$0xff]
        %v534 = vld [vmem:[%s518 + $0x78] sm:$0xff]
        %s535 = scalar_lea.vmem [#allocation11], 2
        %v536 = vld [vmem:[%s535] sm:$0x1]
        %v538 = vperm.slane %v536, 0
        %540 = vmatpush.msra.mxu0 %v534
        %541 = vmatpush.msra.mxu0 %v533
        %542 = vmatpush.msra.mxu0 %v532
        %543 = vmatpush.msra.mxu0 %v531
        %544 = vmatpush.msra.mxu0 %v530
        %545 = vmatpush.msra.mxu0 %v529
        %546 = vmatpush.msra.mxu0 %v528
        %547 = vmatpush.msra.mxu0 %v527
        %548 = vmatpush.msra.mxu0 %v526
        %549 = vmatpush.msra.mxu0 %v525
        %550 = vmatpush.msra.mxu0 %v524
        %551 = vmatpush.msra.mxu0 %v523
        %552 = vmatpush.msra.mxu0 %v522
        %553 = vmatpush.msra.mxu0 %v521
        %554 = vmatpush.msra.mxu0 %v520
        %555 = vmatpush.msra.mxu0 %v519
        %556 = vmatmul.f32.gmra.mxu0 %v517
        %v557 = vpop.f32.mrf.mxu0
        %v558 = vadd.f32 %v538, %v557
        %559 = vdwg.mxu0
        %v560 = vld [vmem:[#allocation6] sm:$0xff]
        %vm561 = vcmask 64512
        %v563 = vsel %vm561, %v560, 0
        %565 = vmatpush.msra.mxu0 0.0
        %566 = vmatpush.msra.mxu0 0.0
        %567 = vmatpush.msra.mxu0 0.0
        %568 = vmatpush.msra.mxu0 0.0
        %569 = vmatpush.msra.mxu0 0.0
        %570 = vmatpush.msra.mxu0 0.0
        %571 = vmatpush.msra.mxu0 0.0
        %572 = vmatpush.msra.mxu0 0.0
        %573 = vmatpush.msra.mxu0 0.0
        %574 = vmatpush.msra.mxu0 0.0
        %575 = vmatpush.msra.mxu0 0.0
        %576 = vmatpush.msra.mxu0 0.0
        %577 = vmatpush.msra.mxu0 0.0
        %578 = vmatpush.msra.mxu0 0.0
        %579 = vmatpush.msra.mxu0 0.0
        %580 = vmatpush.msra.mxu0 %v558
        %581 = vmatmul.f32.gmra.mxu0 %v563
        %v582 = vpop.f32.mrf.mxu0
        %v583 = vadd.f32 0.0, %v582
        %584 = vdwg.mxu0
        %s585 = scalar_lea.vmem [#allocation9], 384
        %v586 = vld [vmem:[%s585] sm:$0xff]
        %v587 = vld [vmem:[%s585 + $0x8] sm:$0xff]
        %v588 = vld [vmem:[%s585 + $0x10] sm:$0xff]
        %v589 = vld [vmem:[%s585 + $0x18] sm:$0xff]
        %v590 = vld [vmem:[%s585 + $0x20] sm:$0xff]
        %v591 = vld [vmem:[%s585 + $0x28] sm:$0xff]
        %v592 = vld [vmem:[%s585 + $0x30] sm:$0xff]
        %v593 = vld [vmem:[%s585 + $0x38] sm:$0xff]
        %v594 = vld [vmem:[%s585 + $0x40] sm:$0xff]
        %v595 = vld [vmem:[%s585 + $0x48] sm:$0xff]
        %v596 = vld [vmem:[%s585 + $0x50] sm:$0xff]
        %v597 = vld [vmem:[%s585 + $0x58] sm:$0xff]
        %v598 = vld [vmem:[%s585 + $0x60] sm:$0xff]
        %v599 = vld [vmem:[%s585 + $0x68] sm:$0xff]
        %v600 = vld [vmem:[%s585 + $0x70] sm:$0xff]
        %v601 = vld [vmem:[%s585 + $0x78] sm:$0xff]
        %s602 = scalar_lea.vmem [#allocation11], 3
        %v603 = vld [vmem:[%s602] sm:$0x1]
        %v605 = vperm.slane %v603, 0
        %607 = vmatpush.msra.mxu0 %v601
        %608 = vmatpush.msra.mxu0 %v600
        %609 = vmatpush.msra.mxu0 %v599
        %610 = vmatpush.msra.mxu0 %v598
        %611 = vmatpush.msra.mxu0 %v597
        %612 = vmatpush.msra.mxu0 %v596
        %613 = vmatpush.msra.mxu0 %v595
        %614 = vmatpush.msra.mxu0 %v594
        %615 = vmatpush.msra.mxu0 %v593
        %616 = vmatpush.msra.mxu0 %v592
        %617 = vmatpush.msra.mxu0 %v591
        %618 = vmatpush.msra.mxu0 %v590
        %619 = vmatpush.msra.mxu0 %v589
        %620 = vmatpush.msra.mxu0 %v588
        %621 = vmatpush.msra.mxu0 %v587
        %622 = vmatpush.msra.mxu0 %v586
        %623 = vmatmul.f32.gmra.mxu0 %v583
        %v624 = vpop.f32.mrf.mxu0
        %v625 = vadd.f32 %v605, %v624
        %626 = vdwg.mxu0
        %v627 = vmax.f32 %v625, 0.0
        %s628 = scalar_lea.vmem [#allocation9], 512
        %v629 = vld [vmem:[%s628] sm:$0xff]
        %v630 = vld [vmem:[%s628 + $0x8] sm:$0xff]
        %v631 = vld [vmem:[%s628 + $0x10] sm:$0xff]
        %v632 = vld [vmem:[%s628 + $0x18] sm:$0xff]
        %v633 = vld [vmem:[%s628 + $0x20] sm:$0xff]
        %v634 = vld [vmem:[%s628 + $0x28] sm:$0xff]
        %v635 = vld [vmem:[%s628 + $0x30] sm:$0xff]
        %v636 = vld [vmem:[%s628 + $0x38] sm:$0xff]
        %v637 = vld [vmem:[%s628 + $0x40] sm:$0xff]
        %v638 = vld [vmem:[%s628 + $0x48] sm:$0xff]
        %v639 = vld [vmem:[%s628 + $0x50] sm:$0xff]
        %v640 = vld [vmem:[%s628 + $0x58] sm:$0xff]
        %v641 = vld [vmem:[%s628 + $0x60] sm:$0xff]
        %v642 = vld [vmem:[%s628 + $0x68] sm:$0xff]
        %v643 = vld [vmem:[%s628 + $0x70] sm:$0xff]
        %v644 = vld [vmem:[%s628 + $0x78] sm:$0xff]
        %s645 = scalar_lea.vmem [#allocation11], 4
        %v646 = vld [vmem:[%s645] sm:$0x1]
        %v648 = vperm.slane %v646, 0
        %650 = vmatpush.msra.mxu0 %v644
        %651 = vmatpush.msra.mxu0 %v643
        %652 = vmatpush.msra.mxu0 %v642
        %653 = vmatpush.msra.mxu0 %v641
        %654 = vmatpush.msra.mxu0 %v640
        %655 = vmatpush.msra.mxu0 %v639
        %656 = vmatpush.msra.mxu0 %v638
        %657 = vmatpush.msra.mxu0 %v637
        %658 = vmatpush.msra.mxu0 %v636
        %659 = vmatpush.msra.mxu0 %v635
        %660 = vmatpush.msra.mxu0 %v634
        %661 = vmatpush.msra.mxu0 %v633
        %662 = vmatpush.msra.mxu0 %v632
        %663 = vmatpush.msra.mxu0 %v631
        %664 = vmatpush.msra.mxu0 %v630
        %665 = vmatpush.msra.mxu0 %v629
        %666 = vmatmul.f32.gmra.mxu0 %v627
        %v667 = vpop.f32.mrf.mxu0
        %v668 = vadd.f32 %v648, %v667
        %669 = vdwg.mxu0
        %v670 = vmax.f32 %v668, 0.0
        %s671 = scalar_lea.vmem [#allocation9], 640
        %v672 = vld [vmem:[%s671] sm:$0xff]
        %v673 = vld [vmem:[%s671 + $0x8] sm:$0xff]
        %v674 = vld [vmem:[%s671 + $0x10] sm:$0xff]
        %v675 = vld [vmem:[%s671 + $0x18] sm:$0xff]
        %v676 = vld [vmem:[%s671 + $0x20] sm:$0xff]
        %v677 = vld [vmem:[%s671 + $0x28] sm:$0xff]
        %v678 = vld [vmem:[%s671 + $0x30] sm:$0xff]
        %v679 = vld [vmem:[%s671 + $0x38] sm:$0xff]
        %v680 = vld [vmem:[%s671 + $0x40] sm:$0xff]
        %v681 = vld [vmem:[%s671 + $0x48] sm:$0xff]
        %v682 = vld [vmem:[%s671 + $0x50] sm:$0xff]
        %v683 = vld [vmem:[%s671 + $0x58] sm:$0xff]
        %v684 = vld [vmem:[%s671 + $0x60] sm:$0xff]
        %v685 = vld [vmem:[%s671 + $0x68] sm:$0xff]
        %v686 = vld [vmem:[%s671 + $0x70] sm:$0xff]
        %v687 = vld [vmem:[%s671 + $0x78] sm:$0xff]
        %s688 = scalar_lea.vmem [#allocation11], 5
        %v689 = vld [vmem:[%s688] sm:$0x1]
        %v691 = vperm.slane %v689, 0
        %693 = vmatpush.msra.mxu0 %v687
        %694 = vmatpush.msra.mxu0 %v686
        %695 = vmatpush.msra.mxu0 %v685
        %696 = vmatpush.msra.mxu0 %v684
        %697 = vmatpush.msra.mxu0 %v683
        %698 = vmatpush.msra.mxu0 %v682
        %699 = vmatpush.msra.mxu0 %v681
        %700 = vmatpush.msra.mxu0 %v680
        %701 = vmatpush.msra.mxu0 %v679
        %702 = vmatpush.msra.mxu0 %v678
        %703 = vmatpush.msra.mxu0 %v677
        %704 = vmatpush.msra.mxu0 %v676
        %705 = vmatpush.msra.mxu0 %v675
        %706 = vmatpush.msra.mxu0 %v674
        %707 = vmatpush.msra.mxu0 %v673
        %708 = vmatpush.msra.mxu0 %v672
        %709 = vmatmul.f32.gmra.mxu0 %v670
        %v710 = vpop.f32.mrf.mxu0
        %v711 = vadd.f32 %v691, %v710
        %712 = vdwg.mxu0
        %v713 = vmax.f32 %v711, 0.0
        %v714 = vld [vmem:[#allocation12] sm:$0xff]
        %v715 = vld [vmem:[#allocation12 + $0x8] sm:$0xff]
        %v716 = vld [vmem:[#allocation12 + $0x10] sm:$0xff]
        %v717 = vld [vmem:[#allocation12 + $0x18] sm:$0xff]
        %v718 = vld [vmem:[#allocation12 + $0x20] sm:$0xff]
        %v719 = vld [vmem:[#allocation12 + $0x28] sm:$0xff]
        %v720 = vld [vmem:[#allocation12 + $0x30] sm:$0xff]
        %v721 = vld [vmem:[#allocation12 + $0x38] sm:$0xff]
        %v722 = vld [vmem:[#allocation12 + $0x40] sm:$0xff]
        %v723 = vld [vmem:[#allocation12 + $0x48] sm:$0xff]
        %v724 = vld [vmem:[#allocation12 + $0x50] sm:$0xff]
        %v725 = vld [vmem:[#allocation12 + $0x58] sm:$0xff]
        %v726 = vld [vmem:[#allocation12 + $0x60] sm:$0xff]
        %v727 = vld [vmem:[#allocation12 + $0x68] sm:$0xff]
        %v728 = vld [vmem:[#allocation12 + $0x70] sm:$0xff]
        %v729 = vld [vmem:[#allocation12 + $0x78] sm:$0xff]
        %v730 = vld [vmem:[%s7] sm:$0x1]
        %v732 = vperm.slane %v730, 0
        %734 = vmatpush.msra.mxu0 %v729
        %735 = vmatpush.msra.mxu0 %v728
        %736 = vmatpush.msra.mxu0 %v727
        %737 = vmatpush.msra.mxu0 %v726
        %738 = vmatpush.msra.mxu0 %v725
        %739 = vmatpush.msra.mxu0 %v724
        %740 = vmatpush.msra.mxu0 %v723
        %741 = vmatpush.msra.mxu0 %v722
        %742 = vmatpush.msra.mxu0 %v721
        %743 = vmatpush.msra.mxu0 %v720
        %744 = vmatpush.msra.mxu0 %v719
        %745 = vmatpush.msra.mxu0 %v718
        %746 = vmatpush.msra.mxu0 %v717
        %747 = vmatpush.msra.mxu0 %v716
        %748 = vmatpush.msra.mxu0 %v715
        %749 = vmatpush.msra.mxu0 %v714
        %750 = vmatmul.f32.gmra.mxu0 %v713
        %v751 = vpop.f32.mrf.mxu0
        %v752 = vadd.f32 %v732, %v751
        %753 = vdwg.mxu0
        %v754 = vsub.f32 %v392, %v752
        %p755 = scmp.eq.s32.totalorder %s26, 0
        // Predicated region
        $region77: #{tpu_custom_call.1} parent=51 // pred_check
          %p756 = pneg %p755
        $region78: #{tpu_custom_call.1} parent=51 // pred_check_branch
          %758 = sbr.rel (%p756) target = $region80
        $region79: #{tpu_custom_call.1} parent=51 // pred_region
          %s759 = scalar_lea.smem [#allocation2], 0
          %760 = sst [smem:[%s759]] 0.0
        $region80: #{tpu_custom_call.1} parent=51 // pred_fallthru
          _
        %s761 = sld [smem:[#allocation2]]
        %v762 = vmul.f32 %v754, %v754
        %763 = vadd.xlane.f32.xlu0 %v762
        %v764 = vpop.xlane.xlu0 %763
        %v765 = vrot.slane %v764, 4
        %v766 = vadd.f32 %v764, %v765
        %v767 = vrot.slane %v766, 2
        %v768 = vadd.f32 %v766, %v767
        %v769 = vrot.slane %v768, 1
        %v770 = vadd.f32 %v768, %v769
        %s771 = vtos %v770
        %s772 = sadd.f32 %s761, %s771
        %s773 = scalar_lea.smem [#allocation2], 0
        %774 = sst [smem:[%s773]] %s772
        %p775 = scmp.eq.s32.totalorder %s26, 1
        // Predicated region
        $region81: #{tpu_custom_call.1} parent=51 // pred_check
          %p776 = pneg %p775
        $region82: #{tpu_custom_call.1} parent=51 // pred_check_branch
          %778 = sbr.rel (%p776) target = $region84
        $region83: #{tpu_custom_call.1} parent=51 // pred_region
          %s779 = sld [smem:[#allocation2]]
          %s780 = scalar_lea.smem [#allocation14], 0
          %781 = sst [smem:[%s780]] %s779
        $region84: #{tpu_custom_call.1} parent=51 // pred_fallthru
          _
        // Predicated region
        $region85: #{tpu_custom_call.1} parent=51 // pred_check
          %p782 = pneg %p212
        $region86: #{tpu_custom_call.1} parent=51 // pred_check_branch
          %784 = sbr.rel (%p782) target = $region88
        $region87: #{tpu_custom_call.1} parent=51 // pred_region
          %786 = vsyncadd [#allocation5], 0
          %s788 = sshll.u32 %s8, 4
          %s789 = int_to_ptr.hbm [resolvable:$true] %s788
          %791 = dma.smem_to_hbm [#allocation14], 16, %s789, [#allocation5]
        $region88: #{tpu_custom_call.1} parent=51 // pred_fallthru
          _
        // Predicated region
        $region89: #{tpu_custom_call.1} parent=51 // pred_check
          %p792 = pneg %p212
        $region90: #{tpu_custom_call.1} parent=51 // pred_check_branch
          %794 = sbr.rel (%p792) target = $region92
        $region91: #{tpu_custom_call.1} parent=51 // pred_region
          %796 = dma.done [#allocation5], 16
        $region92: #{tpu_custom_call.1} parent=51 // pred_fallthru
          _
        %797 = sfence
      $region52: #{tpu_custom_call.1} parent=5 // pred_fallthru
        _
      %p798 = scmp.le.s32.totalorder 2, %s21
      // Predicated region
      $region93: #{tpu_custom_call.1} parent=5 // pred_check
        %p799 = pneg %p798
      $region94: #{tpu_custom_call.1} parent=5 // pred_check_branch
        %801 = sbr.rel (%p799) target = $region96
      $region95: #{tpu_custom_call.1} parent=5 // pred_region
        %s802 = ssub.s32 %s21, 2
      $region96: #{tpu_custom_call.1} parent=5 // pred_fallthru
        _
    $region6: #{tpu_custom_call.1} parent=1 // loop_footer
      %s25 = sadd.s32 1, %s21
    $region7: #{tpu_custom_call.1} parent=1 // loop_footer_branch
      %20 = sbr.rel target = $region3
    $region8: #{tpu_custom_call.1} parent=1 // loop_exit
      _
    %803 = vsyncpa [#allocation4], 1
    %s804 = scalar_lea.sflag [#allocation4], 1
    %805 = vsyncpa %s804, 1
    %806 = vsyncpa [#allocation7], 1
    %807 = vsyncpa [#allocation10], 1
    %808 = vsyncpa [#allocation13], 1
    %809 = vsyncpa [#allocation5], 1
    %s810 = scalar_lea.sflag [#allocation5], 1
    %811 = vsyncpa %s810, 1

</llo_original>
